<compile_context>
chip_gen: v6e
topology: v6e:2x2x1
jax: 0.10.0
libtpu: 0.0.40
codegen_flags: <defaults>
</compile_context>

<pallas_src>
import functools
import inspect
from typing import NamedTuple

import jax
import jax.numpy as jnp
import numpy as np
from jax.experimental import pallas as pl
from jax.experimental.pallas import tpu as pltpu

_LANE = 128


def _round_up(x, m):
    return ((x + m - 1) // m) * m


def _cdiv(a, b):
    return -(-a // b)


def _pad2d(a, rows, cols):
    r, c = a.shape
    if r == rows and c == cols:
        return a
    return jnp.pad(a, ((0, rows - r), (0, cols - c)))


def _supports_single_buffering():
    """One-time static capability check for pl.Buffered / BlockSpec(pipeline_mode=...)."""
    if not hasattr(pl, "Buffered"):
        return False
    try:
        return "pipeline_mode" in inspect.signature(pl.BlockSpec).parameters
    except (TypeError, ValueError):
        return True


_SINGLE_BUFFER = _supports_single_buffering()


@functools.lru_cache(maxsize=None)
def _device_config():
    """Per-generation tiles and VMEM budgets (v5e/v6e: 128 MiB VMEM; v7x: 64 MiB/TC)."""
    try:
        kind = jax.devices()[0].device_kind.lower()
    except Exception:
        kind = ""
    is_v7 = ("v7" in kind) or ("7x" in kind)
    is_v5 = "v5" in kind
    phys_vmem = (64 if is_v7 else 128) * 1024 * 1024
    if hasattr(pltpu, "get_tpu_info"):
        try:  # refine from the hardware query; never exceed the conservative table value
            phys_vmem = min(phys_vmem, int(pltpu.get_tpu_info().vmem_capacity_bytes))
        except Exception:
            pass
    return dict(
        tm_pref=128 if is_v5 else 256,
        tn_pref=128 if is_v5 else 256,
        tk_pref=512,
        fuse_budget=int(phys_vmem * (0.62 if is_v7 else 0.70)),
        vmem_cap=int(phys_vmem * 0.75),
        two_tc=is_v7,
    )


# ----------------------------------------------------------------------------------
# One-time parameter preparation (lane padding + weight dtype cast, done off the
# per-forward critical path).
# ----------------------------------------------------------------------------------
class MLPParams(NamedTuple):
    weights: tuple        # lane-padded, compute_dtype, shapes (dims_p[i], dims_p[i+1])
    biases: tuple         # lane-padded, float32, shapes (1, dims_p[i+1])
    dims_p: tuple         # 128-padded feature dims, length num_layers + 1
    in_dim: int
    out_dim: int
    compute_dtype: np.dtype


def prepare_mlp_params(weights, biases, compute_dtype=jnp.bfloat16):
    """weights[i]: (in_i, out_i) (pre-transposed vs. torch), biases[i]: (out_i,).
    Pads every feature dim to a multiple of 128 (zero padding is exact under ReLU)
    and casts weights to the matmul dtype (default bf16: MXU-native, half the bytes)."""
    compute_dtype = jnp.dtype(compute_dtype)
    in_dim = int(weights[0].shape[0])
    out_dim = int(weights[-1].shape[1])
    dims = [in_dim] + [int(w.shape[1]) for w in weights]
    dims_p = tuple(_round_up(d, _LANE) for d in dims)
    weights_p = tuple(
        _pad2d(jnp.asarray(w).astype(compute_dtype), dims_p[i], dims_p[i + 1])
        for i, w in enumerate(weights))
    biases_p = tuple(
        _pad2d(jnp.asarray(b).reshape(1, -1).astype(jnp.float32), 1, dims_p[i + 1])
        for i, b in enumerate(biases))
    return MLPParams(weights_p, biases_p, dims_p, in_dim, out_dim, compute_dtype)


def _choose_tm(m, tm_pref, row_align, two_tc):
    """Row tile: near the MXU-preferred size but padding-aware, and >= 2 row tiles on
    dual-TensorCore chips (v7x) so both cores get work."""
    m_al = _round_up(max(m, 1), row_align)
    n_tiles = _cdiv(m_al, tm_pref)
    if two_tc and n_tiles < 2 and m_al >= 2 * row_align:
        n_tiles = 2
    tm = _round_up(_cdiv(m_al, n_tiles), row_align)
    mp = _round_up(m_al, tm)
    return tm, mp


# ----------------------------------------------------------------------------------
# Fused path: the whole layer stack in one kernel; weights resident, activations in VMEM.
# ----------------------------------------------------------------------------------
def _fused_mlp_kernel(*refs, num_layers, dims_p, compute_dtype):
    # refs = (x, w0, b0, ..., w_{L-1}, b_{L-1}, o, [act0, act1])
    x_ref = refs[0]
    o_ref = refs[1 + 2 * num_layers]
    act_refs = refs[2 + 2 * num_layers:]          # ping-pong activation scratch (L > 1)

    h = x_ref[...].astype(compute_dtype)
    for i in range(num_layers):
        w = refs[1 + 2 * i][...]                  # already compute_dtype (pre-cast)
        b = refs[2 + 2 * i][...]                  # float32 (1, n)
        y = jnp.dot(h, w, preferred_element_type=jnp.float32) + b
        if i < num_layers - 1:
            y = jnp.maximum(y, 0.0)
            n_next = dims_p[i + 1]
            buf = act_refs[i % 2]
            buf[:, :n_next] = y.astype(compute_dtype)   # bound live f32 temporaries
            h = buf[:, :n_next]
        else:
            o_ref[...] = y.astype(o_ref.dtype)


def _fused_mlp_call(x_p, params: MLPParams, *, tm, out_dtype, vmem_limit):
    mp, k0p = x_p.shape
    num_layers = len(params.weights)
    dims_p = params.dims_p
    n_last = dims_p[-1]

    def resident_spec(shape):
        # Fully resident across the row grid: constant index_map; single-buffer when
        # supported so the weight is not double-buffered in VMEM.
        index_map = lambda i: (0, 0)
        if _SINGLE_BUFFER:
            return pl.BlockSpec(shape, index_map, pipeline_mode=pl.Buffered(1))
        return pl.BlockSpec(shape, index_map)

    in_specs = [pl.BlockSpec((tm, k0p), lambda i: (i, 0))]
    flat_params = []
    for w, b in zip(params.weights, params.biases):
        in_specs += [resident_spec(w.shape), resident_spec(b.shape)]
        flat_params += [w, b]

    scratch_shapes = []
    if num_layers > 1:
        max_inter = max(dims_p[1:-1])
        scratch_shapes = [pltpu.VMEM((tm, max_inter), params.compute_dtype)
                          for _ in range(2)]

    flops = 2 * mp * sum(dims_p[i] * dims_p[i + 1] for i in range(num_layers))
    bytes_accessed = (
        mp * k0p * x_p.dtype.itemsize
        + sum(int(w.size) * w.dtype.itemsize for w in params.weights)
        + sum(int(b.size) * b.dtype.itemsize for b in params.biases)
        + mp * n_last * jnp.dtype(out_dtype).itemsize)

    kernel = functools.partial(_fused_mlp_kernel, num_layers=num_layers,
                               dims_p=dims_p, compute_dtype=params.compute_dtype)
    return pl.pallas_call(
        kernel,
        out_shape=jax.ShapeDtypeStruct((mp, n_last), out_dtype),
        grid_spec=pltpu.PrefetchScalarGridSpec(
            num_scalar_prefetch=0,
            grid=(mp // tm,),
            in_specs=in_specs,
            out_specs=pl.BlockSpec((tm, n_last), lambda i: (i, 0)),
            scratch_shapes=scratch_shapes,
        ),
        compiler_params=pltpu.CompilerParams(
            dimension_semantics=("parallel",),
            vmem_limit_bytes=vmem_limit,
        ),
        cost_estimate=pl.CostEstimate(flops=flops, transcendentals=0,
                                      bytes_accessed=bytes_accessed),
    )(x_p, *flat_params)


# ----------------------------------------------------------------------------------
# Fallback path: M/N/K-tiled linear with f32 accumulator (scales to any layer size).
# ----------------------------------------------------------------------------------
def _tiled_linear_kernel(x_ref, w_ref, b_ref, o_ref, acc_ref, *, apply_relu,
                         compute_dtype):
    k = pl.program_id(2)

    @pl.when(k == 0)
    def _init():
        acc_ref[...] = jnp.zeros_like(acc_ref)

    acc_ref[...] += jnp.dot(x_ref[...].astype(compute_dtype), w_ref[...],
                            preferred_element_type=jnp.float32)

    @pl.when(k == pl.num_programs(2) - 1)
    def _finalize():
        y = acc_ref[...] + b_ref[...]
        if apply_relu:
            y = jnp.maximum(y, 0.0)
        o_ref[...] = y.astype(o_ref.dtype)


def _divisor_tile(dim_p, pref):
    """Largest multiple of 128 that divides dim_p (a multiple of 128) and is <= pref."""
    t = min(pref, dim_p)
    while dim_p % t:
        t -= _LANE
    return t


def pallas_linear_tiled(x_p, w_p, b_p, *, apply_relu, tm, tn_pref, tk_pref,
                        out_dtype, compute_dtype, vmem_cap):
    """y = x_p @ w_p + b_p (optional ReLU). All dims already lane-padded; tm | Mp."""
    mp, kp = x_p.shape
    kw, np_ = w_p.shape
    assert kp == kw and mp % tm == 0
    tn = _divisor_tile(np_, tn_pref)
    tk = _divisor_tile(kp, tk_pref)

    est = (2 * (tm * tk * x_p.dtype.itemsize + tk * tn * w_p.dtype.itemsize
                + tn * 4 + tm * tn * jnp.dtype(out_dtype).itemsize)
           + tm * tn * 4)
    vmem_limit = int(min(vmem_cap, max(2 * est, 32 * 1024 * 1024)))
    flops = 2 * mp * kp * np_
    bytes_accessed = (mp * kp * x_p.dtype.itemsize + kp * np_ * w_p.dtype.itemsize
                      + np_ * 4 + mp * np_ * jnp.dtype(out_dtype).itemsize)

    kernel = functools.partial(_tiled_linear_kernel, apply_relu=apply_relu,
                               compute_dtype=compute_dtype)
    return pl.pallas_call(
        kernel,
        out_shape=jax.ShapeDtypeStruct((mp, np_), out_dtype),
        grid_spec=pltpu.PrefetchScalarGridSpec(
            num_scalar_prefetch=0,
            grid=(mp // tm, np_ // tn, kp // tk),     # reduction axis last
            in_specs=[
                pl.BlockSpec((tm, tk), lambda i, j, k: (i, k)),
                pl.BlockSpec((tk, tn), lambda i, j, k: (k, j)),
                pl.BlockSpec((1, tn), lambda i, j, k: (0, j)),
            ],
            out_specs=pl.BlockSpec((tm, tn), lambda i, j, k: (i, j)),
            scratch_shapes=[pltpu.VMEM((tm, tn), jnp.float32)],
        ),
        compiler_params=pltpu.CompilerParams(
            dimension_semantics=("parallel", "parallel", "arbitrary"),
            vmem_limit_bytes=vmem_limit,
        ),
        cost_estimate=pl.CostEstimate(flops=flops, transcendentals=0,
                                      bytes_accessed=bytes_accessed),
    )(x_p, w_p, b_p)


# ----------------------------------------------------------------------------------
# Forward pass mirroring MLP.forward (ReLU after every layer except the last).
# ----------------------------------------------------------------------------------
def mlp_forward(x, params: MLPParams, *, force_tiled=False):
    """x: (..., in_dim) -> (..., out_dim)."""
    cfg = _device_config()
    num_layers = len(params.weights)
    dims_p = params.dims_p
    compute_dtype = params.compute_dtype
    lead = x.shape[:-1]
    assert x.shape[-1] == params.in_dim
    out_dtype = x.dtype

    x2d = x.reshape(-1, params.in_dim)
    m = x2d.shape[0]
    row_align = 16 if compute_dtype.itemsize < 4 else 8
    tm, mp = _choose_tm(m, cfg["tm_pref"], row_align, cfg["two_tc"])
    x_p = _pad2d(x2d, mp, dims_p[0])

    # VMEM footprint estimate for the fully fused kernel.
    w_bytes = sum(int(w.size) * w.dtype.itemsize for w in params.weights)
    b_bytes = sum(int(b.size) * b.dtype.itemsize for b in params.biases)
    buf_factor = 1 if _SINGLE_BUFFER else 2
    max_inter = max(dims_p[1:-1]) if num_layers > 1 else 0
    est = (buf_factor * (w_bytes + b_bytes)
           + 2 * tm * dims_p[0] * x_p.dtype.itemsize              # double-buffered in
           + 2 * tm * dims_p[-1] * jnp.dtype(out_dtype).itemsize  # double-buffered out
           + 2 * tm * max_inter * compute_dtype.itemsize          # ping-pong activations
           + 2 * tm * max(dims_p) * 4)                            # live f32 layer output
    vmem_limit = int(min(cfg["vmem_cap"], max(2 * est, 32 * 1024 * 1024)))

    if not force_tiled and est <= cfg["fuse_budget"]:
        out_p = _fused_mlp_call(x_p, params, tm=tm, out_dtype=out_dtype,
                                vmem_limit=vmem_limit)
    else:
        # TODO(synk): weight-streaming middle mode (activation resident in VMEM, weight
        # tiles pipelined) before paying full per-layer HBM round trips (v7x, 64 MiB VMEM).
        h = x_p
        for i in range(num_layers):
            last = i == num_layers - 1
            h = pallas_linear_tiled(
                h, params.weights[i], params.biases[i],
                apply_relu=not last, tm=tm,
                tn_pref=cfg["tn_pref"], tk_pref=cfg["tk_pref"],
                out_dtype=out_dtype if last else compute_dtype,
                compute_dtype=compute_dtype, vmem_cap=cfg["vmem_cap"])
        out_p = h

    return out_p[:m, :params.out_dim].reshape(*lead, params.out_dim)


def init_mlp_params(key, input_dim, hidden_dim, output_dim, num_layers):
    """Deterministic init matching nn.Linear shapes (stored transposed: (in, out))."""
    h = [hidden_dim] * (num_layers - 1)
    in_dims = [input_dim] + h
    out_dims = h + [output_dim]
    weights, biases = [], []
    for n_in, n_out in zip(in_dims, out_dims):
        key, wk, bk = jax.random.split(key, 3)
        bound = 1.0 / (n_in ** 0.5)
        weights.append(jax.random.uniform(wk, (n_in, n_out), jnp.float32,
                                          minval=-bound, maxval=bound))
        biases.append(jax.random.uniform(bk, (n_out,), jnp.float32,
                                         minval=-bound, maxval=bound))
    return weights, biases


if __name__ == "__main__":
    # MLP(input_dim=32, hidden_dim=32, output_dim=16, num_layers=3) on x of (2, 8, 32).
    input_dim, hidden_dim, output_dim, num_layers = 32, 32, 16, 3
    batch, seq = 2, 8

    key = jax.random.PRNGKey(0)
    key, xk = jax.random.split(key)
    x = jax.random.normal(xk, (batch, seq, input_dim), jnp.float32)
    weights, biases = init_mlp_params(key, input_dim, hidden_dim, output_dim, num_layers)

    # float64 numpy reference (same semantics as the PyTorch module).
    h_ref = np.asarray(x, np.float64).reshape(-1, input_dim)
    for i in range(num_layers):
        h_ref = h_ref @ np.asarray(weights[i], np.float64) + np.asarray(biases[i], np.float64)
        if i < num_layers - 1:
            h_ref = np.maximum(h_ref, 0.0)
    ref = h_ref.reshape(batch, seq, output_dim)

    # Default fast path: bf16 matmuls with f32 accumulation, whole MLP fused in one kernel.
    params = prepare_mlp_params(weights, biases)                # one-time pad + cast
    out_fused = jax.block_until_ready(mlp_forward(x, params))
    # General M/N/K-tiled fallback path (used when the layer stack exceeds VMEM budget).
    out_tiled = jax.block_until_ready(mlp_forward(x, params, force_tiled=True))
    # f32-compute path for a tighter numerical check.
    params_f32 = prepare_mlp_params(weights, biases, compute_dtype=jnp.float32)
    out_f32 = jax.block_until_ready(mlp_forward(x, params_f32))

    assert out_fused.shape == (batch, seq, output_dim)
    assert out_tiled.shape == (batch, seq, output_dim)
    assert out_f32.shape == (batch, seq, output_dim)
    # Tolerances sized for MXU rounding: f32 compute path tight, bf16 paths looser.
    assert np.allclose(np.asarray(out_f32, np.float64), ref, atol=1e-2, rtol=1e-2)
    assert np.allclose(np.asarray(out_fused, np.float64), ref, atol=5e-2, rtol=5e-2)
    assert np.allclose(np.asarray(out_tiled, np.float64), ref, atol=5e-2, rtol=5e-2)

    print("KERNEL_OK")
</pallas_src>

<mosaic_0001>
module attributes {stable_mosaic.version = 11 : i64} {
  func.func @_fused_mlp_kernel(%arg0: i32, %arg1: memref<16x128xf32, #tpu.memory_space<vmem>>, %arg2: memref<128x128xbf16, #tpu.memory_space<vmem>>, %arg3: memref<1x128xf32, #tpu.memory_space<vmem>>, %arg4: memref<128x128xbf16, #tpu.memory_space<vmem>>, %arg5: memref<1x128xf32, #tpu.memory_space<vmem>>, %arg6: memref<128x128xbf16, #tpu.memory_space<vmem>>, %arg7: memref<1x128xf32, #tpu.memory_space<vmem>>, %arg8: memref<16x128xf32, #tpu.memory_space<vmem>>, %arg9: memref<16x128xbf16, #tpu.memory_space<vmem>>, %arg10: memref<16x128xbf16, #tpu.memory_space<vmem>>) attributes {dimension_semantics = [#tpu.dimension_semantics<parallel>], iteration_bounds = array<i64: 1>, scalar_prefetch = 0 : i64, scratch_operands = 2 : i64, tpu.core_type = #tpu.core_type<tc>, window_params = [{transform_indices = @transform_0, window_bounds = array<i64: 16, 128>}, {pipeline_mode = #tpu.pipeline_mode<synchronous>, transform_indices = @transform_1, window_bounds = array<i64: 128, 128>}, {pipeline_mode = #tpu.pipeline_mode<synchronous>, transform_indices = @transform_2, window_bounds = array<i64: 1, 128>}, {pipeline_mode = #tpu.pipeline_mode<synchronous>, transform_indices = @transform_3, window_bounds = array<i64: 128, 128>}, {pipeline_mode = #tpu.pipeline_mode<synchronous>, transform_indices = @transform_4, window_bounds = array<i64: 1, 128>}, {pipeline_mode = #tpu.pipeline_mode<synchronous>, transform_indices = @transform_5, window_bounds = array<i64: 128, 128>}, {pipeline_mode = #tpu.pipeline_mode<synchronous>, transform_indices = @transform_6, window_bounds = array<i64: 1, 128>}, {transform_indices = @transform_7, window_bounds = array<i64: 16, 128>}]} {
    %c0 = arith.constant 0 : index
    %c0_0 = arith.constant 0 : index
    %0 = vector.load %arg1[%c0, %c0_0] : memref<16x128xf32, #tpu.memory_space<vmem>>, vector<16x128xf32>
    %1 = arith.truncf %0 : vector<16x128xf32> to vector<16x128xbf16>
    %c0_1 = arith.constant 0 : index
    %c0_2 = arith.constant 0 : index
    %2 = vector.load %arg2[%c0_1, %c0_2] : memref<128x128xbf16, #tpu.memory_space<vmem>>, vector<128x128xbf16>
    %c0_3 = arith.constant 0 : index
    %c0_4 = arith.constant 0 : index
    %3 = vector.load %arg3[%c0_3, %c0_4] : memref<1x128xf32, #tpu.memory_space<vmem>>, vector<1x128xf32>
    %cst = arith.constant dense<0.000000e+00> : vector<16x128xf32>
    %4 = tpu.matmul %1, %2, %cst {dimension_numbers = #tpu.dot_dimension_numbers<[1], [0], [0], [1], [0, 0, 1, 1], [], []>} : vector<16x128xbf16>, vector<128x128xbf16>, vector<16x128xf32> -> vector<16x128xf32>
    %5 = vector.broadcast %3 : vector<1x128xf32> to vector<16x128xf32>
    %6 = arith.addf %4, %5 : vector<16x128xf32>
    %cst_5 = arith.constant 0.000000e+00 : f32
    %7 = vector.broadcast %cst_5 : f32 to vector<16x128xf32>
    %8 = arith.maximumf %6, %7 : vector<16x128xf32>
    %9 = arith.truncf %8 : vector<16x128xf32> to vector<16x128xbf16>
    %c0_6 = arith.constant 0 : index
    %c0_7 = arith.constant 0 : index
    %10 = vector.load %arg9[%c0_6, %c0_7] : memref<16x128xbf16, #tpu.memory_space<vmem>>, vector<16x128xbf16>
    tpu.vector_store %arg9[%c0_6, %c0_7], %9 {strides = array<i32>} : memref<16x128xbf16, #tpu.memory_space<vmem>>, vector<16x128xbf16>,
    %c0_8 = arith.constant 0 : index
    %c0_9 = arith.constant 0 : index
    %11 = vector.load %arg9[%c0_8, %c0_9] : memref<16x128xbf16, #tpu.memory_space<vmem>>, vector<16x128xbf16>
    %c0_10 = arith.constant 0 : index
    %c0_11 = arith.constant 0 : index
    %12 = vector.load %arg4[%c0_10, %c0_11] : memref<128x128xbf16, #tpu.memory_space<vmem>>, vector<128x128xbf16>
    %c0_12 = arith.constant 0 : index
    %c0_13 = arith.constant 0 : index
    %13 = vector.load %arg5[%c0_12, %c0_13] : memref<1x128xf32, #tpu.memory_space<vmem>>, vector<1x128xf32>
    %cst_14 = arith.constant dense<0.000000e+00> : vector<16x128xf32>
    %14 = tpu.matmul %11, %12, %cst_14 {dimension_numbers = #tpu.dot_dimension_numbers<[1], [0], [0], [1], [0, 0, 1, 1], [], []>} : vector<16x128xbf16>, vector<128x128xbf16>, vector<16x128xf32> -> vector<16x128xf32>
    %15 = vector.broadcast %13 : vector<1x128xf32> to vector<16x128xf32>
    %16 = arith.addf %14, %15 : vector<16x128xf32>
    %cst_15 = arith.constant 0.000000e+00 : f32
    %17 = vector.broadcast %cst_15 : f32 to vector<16x128xf32>
    %18 = arith.maximumf %16, %17 : vector<16x128xf32>
    %19 = arith.truncf %18 : vector<16x128xf32> to vector<16x128xbf16>
    %c0_16 = arith.constant 0 : index
    %c0_17 = arith.constant 0 : index
    %20 = vector.load %arg10[%c0_16, %c0_17] : memref<16x128xbf16, #tpu.memory_space<vmem>>, vector<16x128xbf16>
    tpu.vector_store %arg10[%c0_16, %c0_17], %19 {strides = array<i32>} : memref<16x128xbf16, #tpu.memory_space<vmem>>, vector<16x128xbf16>,
    %c0_18 = arith.constant 0 : index
    %c0_19 = arith.constant 0 : index
    %21 = vector.load %arg10[%c0_18, %c0_19] : memref<16x128xbf16, #tpu.memory_space<vmem>>, vector<16x128xbf16>
    %c0_20 = arith.constant 0 : index
    %c0_21 = arith.constant 0 : index
    %22 = vector.load %arg6[%c0_20, %c0_21] : memref<128x128xbf16, #tpu.memory_space<vmem>>, vector<128x128xbf16>
    %c0_22 = arith.constant 0 : index
    %c0_23 = arith.constant 0 : index
    %23 = vector.load %arg7[%c0_22, %c0_23] : memref<1x128xf32, #tpu.memory_space<vmem>>, vector<1x128xf32>
    %cst_24 = arith.constant dense<0.000000e+00> : vector<16x128xf32>
    %24 = tpu.matmul %21, %22, %cst_24 {dimension_numbers = #tpu.dot_dimension_numbers<[1], [0], [0], [1], [0, 0, 1, 1], [], []>} : vector<16x128xbf16>, vector<128x128xbf16>, vector<16x128xf32> -> vector<16x128xf32>
    %25 = vector.broadcast %23 : vector<1x128xf32> to vector<16x128xf32>
    %26 = arith.addf %24, %25 : vector<16x128xf32>
    %c0_25 = arith.constant 0 : index
    %c0_26 = arith.constant 0 : index
    %27 = vector.load %arg8[%c0_25, %c0_26] : memref<16x128xf32, #tpu.memory_space<vmem>>, vector<16x128xf32>
    tpu.vector_store %arg8[%c0_25, %c0_26], %26 {strides = array<i32>} : memref<16x128xf32, #tpu.memory_space<vmem>>, vector<16x128xf32>,
    return
  }
  func.func @transform_0(%arg0: i32) -> (i32, i32) {
    %c0_i32 = arith.constant 0 : i32
    %c0_i32_0 = arith.constant 0 : i32
    return %arg0, %c0_i32 : i32, i32
  }
  func.func @transform_1(%arg0: i32) -> (i32, i32) {
    %c0_i32 = arith.constant 0 : i32
    %c0_i32_0 = arith.constant 0 : i32
    %c0_i32_1 = arith.constant 0 : i32
    return %c0_i32, %c0_i32_0 : i32, i32
  }
  func.func @transform_2(%arg0: i32) -> (i32, i32) {
    %c0_i32 = arith.constant 0 : i32
    %c0_i32_0 = arith.constant 0 : i32
    %c0_i32_1 = arith.constant 0 : i32
    return %c0_i32, %c0_i32_0 : i32, i32
  }
  func.func @transform_3(%arg0: i32) -> (i32, i32) {
    %c0_i32 = arith.constant 0 : i32
    %c0_i32_0 = arith.constant 0 : i32
    %c0_i32_1 = arith.constant 0 : i32
    return %c0_i32, %c0_i32_0 : i32, i32
  }
  func.func @transform_4(%arg0: i32) -> (i32, i32) {
    %c0_i32 = arith.constant 0 : i32
    %c0_i32_0 = arith.constant 0 : i32
    %c0_i32_1 = arith.constant 0 : i32
    return %c0_i32, %c0_i32_0 : i32, i32
  }
  func.func @transform_5(%arg0: i32) -> (i32, i32) {
    %c0_i32 = arith.constant 0 : i32
    %c0_i32_0 = arith.constant 0 : i32
    %c0_i32_1 = arith.constant 0 : i32
    return %c0_i32, %c0_i32_0 : i32, i32
  }
  func.func @transform_6(%arg0: i32) -> (i32, i32) {
    %c0_i32 = arith.constant 0 : i32
    %c0_i32_0 = arith.constant 0 : i32
    %c0_i32_1 = arith.constant 0 : i32
    return %c0_i32, %c0_i32_0 : i32, i32
  }
  func.func @transform_7(%arg0: i32) -> (i32, i32) {
    %c0_i32 = arith.constant 0 : i32
    %c0_i32_0 = arith.constant 0 : i32
    return %arg0, %c0_i32 : i32, i32
  }
}

</mosaic_0001>

<llo_original>
// kernel: tpu_custom_call.1
$region0: #{tpu_custom_call.1}
  #allocation0 [shape = 'u32[]', space=smem, size = 0x4, offset = 0x4, fixed_abs, tag = 'smem constant byte address 0x4 - core index']
  #allocation1 [shape = 'u32[144,128]{1,0:T(1,128)}', space=vmem, size = 0x12000, scoped, tag = 'internal scratch']
  #allocation2 [shape = 'bf16[16,128]{1,0:T(8,128)(2,1)}', space=vmem, size = 0x1000, scoped, tag = 'scratch operand']
  #allocation3 [shape = 'bf16[16,128]{1,0:T(8,128)(2,1)}', space=vmem, size = 0x1000, scoped, tag = 'scratch operand']
  %s0 = inlined_call_operand.hbm [shape: f32[16,128], index: 0, kind: input, shape index: {}]
  %s1 = inlined_call_operand.hbm [shape: bf16[128,128], index: 1, kind: input, shape index: {}]
  %s2 = inlined_call_operand.vmem [shape: f32[1,128], index: 2, kind: input, shape index: {}]
  %s3 = inlined_call_operand.hbm [shape: bf16[128,128], index: 3, kind: input, shape index: {}]
  %s4 = inlined_call_operand.vmem [shape: f32[1,128], index: 4, kind: input, shape index: {}]
  %s5 = inlined_call_operand.hbm [shape: bf16[128,128], index: 5, kind: input, shape index: {}]
  %s6 = inlined_call_operand.vmem [shape: f32[1,128], index: 6, kind: input, shape index: {}]
  %s7 = inlined_call_operand.hbm [shape: f32[16,128], index: 7, kind: output, shape index: {}]
  %s8 = sld [smem:[#allocation0]]
  $region54: #{tpu_custom_call.1} parent=0
    _
  %s10 = ssub.s32 1, %s8
  %s11 = scalar_select 0, %s10, %s8
  $region1: #{tpu_custom_call.1} parent=0
    #allocation4 [shape = 'u8[8192]{0}', space=vmem, size = 0x2000, scoped, tag = 'input window, operand 0, single buffered']
    #allocation5 [shape = 's32[1]{0}', space=sflag, size = 0x4, scoped, tag = 'scoped memory for tpu_custom_call.1']
    #allocation6 [shape = 's32[1]{0}', space=sflag, size = 0x4, scoped, tag = 'scoped memory for tpu_custom_call.1']
    #allocation7 [shape = 'u8[32768]{0}', space=vmem, size = 0x8000, scoped, tag = 'input window, operand 1, single buffered']
    #allocation8 [shape = 's32[1]{0}', space=sflag, size = 0x4, scoped, tag = 'scoped memory for tpu_custom_call.1']
    #allocation9 [shape = 'u8[32768]{0}', space=vmem, size = 0x8000, scoped, tag = 'input window, operand 3, single buffered']
    #allocation10 [shape = 'u8[32768]{0}', space=vmem, size = 0x8000, scoped, tag = 'input window, operand 5, single buffered']
    #allocation11 [shape = 's32[1]{0}', space=sflag, size = 0x4, scoped, tag = 'scoped memory for tpu_custom_call.1']
    #allocation12 [shape = 'u8[8192]{0}', space=vmem, size = 0x2000, scoped, tag = 'output window, operand 0, single buffered']
    %12 = vsyncpa [#allocation5], 0
    %13 = vsyncpa [#allocation8], 0
    %14 = vsyncpa [#allocation11], 0
    %15 = vsyncpa [#allocation6], 0
    // Predicated region
    $region2: #{tpu_custom_call.1} parent=1 // pred_check
      _
    $region3: #{tpu_custom_call.1} parent=1 // pred_check_branch
      %17 = sbr.rel (0) target = $region5
    $region4: #{tpu_custom_call.1} parent=1 // pred_region
      %s19 = ssub.s32 256, 256
      %20 = vsyncadd [#allocation5], %s19
      %s21 = sshll.u32 [#allocation4], 4
      %s22 = int_to_ptr.vmem [resolvable:$true] %s21
      %27 = dma.hbm_to_vmem [thread:$0]  %s0, 256, %s22, [#allocation5], 128, 128, 8
    $region5: #{tpu_custom_call.1} parent=1 // pred_fallthru
      _
    // Predicated region
    $region6: #{tpu_custom_call.1} parent=1 // pred_check
      _
    $region7: #{tpu_custom_call.1} parent=1 // pred_check_branch
      %29 = sbr.rel (0) target = $region9
    $region8: #{tpu_custom_call.1} parent=1 // pred_region
      %s31 = ssub.s32 1024, 1024
      %32 = vsyncadd [#allocation8], %s31
      %s33 = sshll.u32 [#allocation7], 4
      %s34 = int_to_ptr.vmem [resolvable:$true] %s33
      %39 = dma.hbm_to_vmem [thread:$0]  %s1, 1024, %s34, [#allocation8], 64, 64, 4
    $region9: #{tpu_custom_call.1} parent=1 // pred_fallthru
      _
    // Predicated region
    $region10: #{tpu_custom_call.1} parent=1 // pred_check
      _
    $region11: #{tpu_custom_call.1} parent=1 // pred_check_branch
      %41 = sbr.rel (0) target = $region13
    $region12: #{tpu_custom_call.1} parent=1 // pred_region
      _
    $region13: #{tpu_custom_call.1} parent=1 // pred_fallthru
      _
    // Predicated region
    $region14: #{tpu_custom_call.1} parent=1 // pred_check
      _
    $region15: #{tpu_custom_call.1} parent=1 // pred_check_branch
      %43 = sbr.rel (0) target = $region17
    $region16: #{tpu_custom_call.1} parent=1 // pred_region
      %s45 = ssub.s32 1024, 1024
      %46 = vsyncadd [#allocation8], %s45
      %s47 = sshll.u32 [#allocation9], 4
      %s48 = int_to_ptr.vmem [resolvable:$true] %s47
      %53 = dma.hbm_to_vmem [thread:$0]  %s3, 1024, %s48, [#allocation8], 64, 64, 4
    $region17: #{tpu_custom_call.1} parent=1 // pred_fallthru
      _
    // Predicated region
    $region18: #{tpu_custom_call.1} parent=1 // pred_check
      _
    $region19: #{tpu_custom_call.1} parent=1 // pred_check_branch
      %55 = sbr.rel (0) target = $region21
    $region20: #{tpu_custom_call.1} parent=1 // pred_region
      _
    $region21: #{tpu_custom_call.1} parent=1 // pred_fallthru
      _
    // Predicated region
    $region22: #{tpu_custom_call.1} parent=1 // pred_check
      _
    $region23: #{tpu_custom_call.1} parent=1 // pred_check_branch
      %57 = sbr.rel (0) target = $region25
    $region24: #{tpu_custom_call.1} parent=1 // pred_region
      %s59 = ssub.s32 1024, 1024
      %60 = vsyncadd [#allocation11], %s59
      %s61 = sshll.u32 [#allocation10], 4
      %s62 = int_to_ptr.vmem [resolvable:$true] %s61
      %67 = dma.hbm_to_vmem [thread:$0]  %s5, 1024, %s62, [#allocation11], 64, 64, 4
    $region25: #{tpu_custom_call.1} parent=1 // pred_fallthru
      _
    // Predicated region
    $region26: #{tpu_custom_call.1} parent=1 // pred_check
      _
    $region27: #{tpu_custom_call.1} parent=1 // pred_check_branch
      %69 = sbr.rel (0) target = $region29
    $region28: #{tpu_custom_call.1} parent=1 // pred_region
      _
    $region29: #{tpu_custom_call.1} parent=1 // pred_fallthru
      _
    // Predicated region
    $region30: #{tpu_custom_call.1} parent=1 // pred_check
      _
    $region31: #{tpu_custom_call.1} parent=1 // pred_check_branch
      %71 = sbr.rel (0) target = $region33
    $region32: #{tpu_custom_call.1} parent=1 // pred_region
      %72 = dma.done [#allocation5], 256
    $region33: #{tpu_custom_call.1} parent=1 // pred_fallthru
      _
    // Predicated region
    $region34: #{tpu_custom_call.1} parent=1 // pred_check
      _
    $region35: #{tpu_custom_call.1} parent=1 // pred_check_branch
      %74 = sbr.rel (0) target = $region37
    $region36: #{tpu_custom_call.1} parent=1 // pred_region
      %75 = dma.done [#allocation8], 1024
    $region37: #{tpu_custom_call.1} parent=1 // pred_fallthru
      _
    // Predicated region
    $region38: #{tpu_custom_call.1} parent=1 // pred_check
      _
    $region39: #{tpu_custom_call.1} parent=1 // pred_check_branch
      %77 = sbr.rel (0) target = $region41
    $region40: #{tpu_custom_call.1} parent=1 // pred_region
      %78 = dma.done [#allocation8], 1024
    $region41: #{tpu_custom_call.1} parent=1 // pred_fallthru
      _
    // Predicated region
    $region42: #{tpu_custom_call.1} parent=1 // pred_check
      _
    $region43: #{tpu_custom_call.1} parent=1 // pred_check_branch
      %80 = sbr.rel (0) target = $region45
    $region44: #{tpu_custom_call.1} parent=1 // pred_region
      %81 = dma.done [#allocation11], 1024
    $region45: #{tpu_custom_call.1} parent=1 // pred_fallthru
      _
    %v83 = vld [vmem:[#allocation4] sm:$0xff]
    %v84 = vld [vmem:[#allocation4 + $0x8] sm:$0xff]
    %v85 = vpack.c.bf16 %v84, %v83
    %v86 = vld [vmem:[#allocation7] sm:$0xf]
    %v87 = vld [vmem:[#allocation7 + $0x4] sm:$0xf]
    %v88 = vld [vmem:[#allocation7 + $0x8] sm:$0xf]
    %v89 = vld [vmem:[#allocation7 + $0xc] sm:$0xf]
    %v90 = vld [vmem:[#allocation7 + $0x10] sm:$0xf]
    %v91 = vld [vmem:[#allocation7 + $0x14] sm:$0xf]
    %v92 = vld [vmem:[#allocation7 + $0x18] sm:$0xf]
    %v93 = vld [vmem:[#allocation7 + $0x1c] sm:$0xf]
    %v94 = vld [vmem:[#allocation7 + $0x20] sm:$0xf]
    %v95 = vld [vmem:[#allocation7 + $0x24] sm:$0xf]
    %v96 = vld [vmem:[#allocation7 + $0x28] sm:$0xf]
    %v97 = vld [vmem:[#allocation7 + $0x2c] sm:$0xf]
    %v98 = vld [vmem:[#allocation7 + $0x30] sm:$0xf]
    %v99 = vld [vmem:[#allocation7 + $0x34] sm:$0xf]
    %v100 = vld [vmem:[#allocation7 + $0x38] sm:$0xf]
    %v101 = vld [vmem:[#allocation7 + $0x3c] sm:$0xf]
    %v102 = vld [vmem:[%s2] sm:$0x1]
    %v104 = vlaneseq
    %v105 = vshrl.u32 %v104, 7
    %v106 = vsub.s32 0, %v105
    %v107 = vrot.slane %v102, %v106
    %v125 = vunpack.c.l.b16 %v86
    %v126 = vunpack.c.l.b16 %v87
    %v127 = vunpack.c.l.b16 %v88
    %v128 = vunpack.c.l.b16 %v89
    %v129 = vunpack.c.l.b16 %v90
    %v130 = vunpack.c.l.b16 %v91
    %v131 = vunpack.c.l.b16 %v92
    %v132 = vunpack.c.l.b16 %v93
    %v133 = vunpack.c.l.b16 %v94
    %v134 = vunpack.c.l.b16 %v95
    %v135 = vunpack.c.l.b16 %v96
    %v136 = vunpack.c.l.b16 %v97
    %v137 = vunpack.c.l.b16 %v98
    %v138 = vunpack.c.l.b16 %v99
    %v139 = vunpack.c.l.b16 %v100
    %v140 = vunpack.c.l.b16 %v101
    %v141 = vpack.c.b16 %v126, %v125
    %v142 = vpack.c.b16 %v128, %v127
    %v143 = vpack.c.b16 %v130, %v129
    %v144 = vpack.c.b16 %v132, %v131
    %v145 = vpack.c.b16 %v134, %v133
    %v146 = vpack.c.b16 %v136, %v135
    %v147 = vpack.c.b16 %v138, %v137
    %v148 = vpack.c.b16 %v140, %v139
    %157 = vmatprep.subr.bf16.mxu0 0
    %158 = vmatpush1.bf16.msra.mxu0 %v148
    %159 = vmatprep.subr.bf16.mxu0 0
    %160 = vmatpush1.bf16.msra.mxu0 %v147
    %161 = vmatprep.subr.bf16.mxu0 0
    %162 = vmatpush1.bf16.msra.mxu0 %v146
    %163 = vmatprep.subr.bf16.mxu0 0
    %164 = vmatpush1.bf16.msra.mxu0 %v145
    %165 = vmatprep.subr.bf16.mxu0 0
    %166 = vmatpush1.bf16.msra.mxu0 %v144
    %167 = vmatprep.subr.bf16.mxu0 0
    %168 = vmatpush1.bf16.msra.mxu0 %v143
    %169 = vmatprep.subr.bf16.mxu0 0
    %170 = vmatpush1.bf16.msra.mxu0 %v142
    %171 = vmatprep.subr.bf16.mxu0 0
    %172 = vmatpush1.bf16.msra.mxu0 %v141
    %173 = vmatprep.subr.bf16.mxu0 0
    %174 = vmatpush2.bf16.msra.mxu0 0
    %175 = vmatprep.subr.bf16.mxu0 0
    %176 = vmatpush2.bf16.msra.mxu0 0
    %177 = vmatprep.subr.bf16.mxu0 0
    %178 = vmatpush2.bf16.msra.mxu0 0
    %179 = vmatprep.subr.bf16.mxu0 0
    %180 = vmatpush2.bf16.msra.mxu0 0
    %181 = vmatprep.subr.bf16.mxu0 0
    %182 = vmatpush2.bf16.msra.mxu0 0
    %183 = vmatprep.subr.bf16.mxu0 0
    %184 = vmatpush2.bf16.msra.mxu0 0
    %185 = vmatprep.subr.bf16.mxu0 0
    %186 = vmatpush2.bf16.msra.mxu0 0
    %187 = vmatprep.subr.bf16.mxu0 0
    %188 = vmatpush2.bf16.msra.mxu0 0
    %189 = vmatprep.mubr.bf16.mxu0 0
    %190 = vmatmul.mubr.bf16.gmra.mxu0 %v85
    %v191 = vpop.f32.mrf.mxu0
    %v192 = vadd.f32 %v107, %v191
    %v193 = vpop.f32.mrf.mxu0
    %v194 = vpop.f32.mrf.mxu0
    %v195 = vadd.f32 %v107, %v194
    %v196 = vpop.f32.mrf.mxu0
    %197 = vdwg.mxu0
    %v198 = vmax.f32 %v192, 0.0
    %v199 = vmax.f32 %v195, 0.0
    %v200 = vpack.c.bf16 %v199, %v198
    %v202 = vunpack.c.l.b16 %v200
    %v203 = vunpack.c.h.b16 %v200
    %v204 = vpack.c.b16 %v202, %v202
    %v205 = vpack.c.b16 %v203, %v203
    %208 = vst [vmem:[#allocation2] sm:$0xf] %v204
    %209 = vst [vmem:[#allocation2 + $0x4] sm:$0xf] %v205
    %v210 = vld [vmem:[#allocation2] sm:$0xf]
    %v211 = vld [vmem:[#allocation2 + $0x4] sm:$0xf]
    %v212 = vld [vmem:[#allocation9] sm:$0xf]
    %v213 = vld [vmem:[#allocation9 + $0x4] sm:$0xf]
    %v214 = vld [vmem:[#allocation9 + $0x8] sm:$0xf]
    %v215 = vld [vmem:[#allocation9 + $0xc] sm:$0xf]
    %v216 = vld [vmem:[#allocation9 + $0x10] sm:$0xf]
    %v217 = vld [vmem:[#allocation9 + $0x14] sm:$0xf]
    %v218 = vld [vmem:[#allocation9 + $0x18] sm:$0xf]
    %v219 = vld [vmem:[#allocation9 + $0x1c] sm:$0xf]
    %v220 = vld [vmem:[#allocation9 + $0x20] sm:$0xf]
    %v221 = vld [vmem:[#allocation9 + $0x24] sm:$0xf]
    %v222 = vld [vmem:[#allocation9 + $0x28] sm:$0xf]
    %v223 = vld [vmem:[#allocation9 + $0x2c] sm:$0xf]
    %v224 = vld [vmem:[#allocation9 + $0x30] sm:$0xf]
    %v225 = vld [vmem:[#allocation9 + $0x34] sm:$0xf]
    %v226 = vld [vmem:[#allocation9 + $0x38] sm:$0xf]
    %v227 = vld [vmem:[#allocation9 + $0x3c] sm:$0xf]
    %v228 = vld [vmem:[%s4] sm:$0x1]
    %v230 = vlaneseq
    %v231 = vshrl.u32 %v230, 7
    %v232 = vsub.s32 0, %v231
    %v233 = vrot.slane %v228, %v232
    %v237 = vunpack.c.l.b16 %v210
    %v238 = vunpack.c.l.b16 %v211
    %v239 = vpack.c.b16 %v238, %v237
    %v257 = vunpack.c.l.b16 %v212
    %v258 = vunpack.c.l.b16 %v213
    %v259 = vunpack.c.l.b16 %v214
    %v260 = vunpack.c.l.b16 %v215
    %v261 = vunpack.c.l.b16 %v216
    %v262 = vunpack.c.l.b16 %v217
    %v263 = vunpack.c.l.b16 %v218
    %v264 = vunpack.c.l.b16 %v219
    %v265 = vunpack.c.l.b16 %v220
    %v266 = vunpack.c.l.b16 %v221
    %v267 = vunpack.c.l.b16 %v222
    %v268 = vunpack.c.l.b16 %v223
    %v269 = vunpack.c.l.b16 %v224
    %v270 = vunpack.c.l.b16 %v225
    %v271 = vunpack.c.l.b16 %v226
    %v272 = vunpack.c.l.b16 %v227
    %v273 = vpack.c.b16 %v258, %v257
    %v274 = vpack.c.b16 %v260, %v259
    %v275 = vpack.c.b16 %v262, %v261
    %v276 = vpack.c.b16 %v264, %v263
    %v277 = vpack.c.b16 %v266, %v265
    %v278 = vpack.c.b16 %v268, %v267
    %v279 = vpack.c.b16 %v270, %v269
    %v280 = vpack.c.b16 %v272, %v271
    %289 = vmatprep.subr.bf16.mxu0 0
    %290 = vmatpush1.bf16.msra.mxu0 %v280
    %291 = vmatprep.subr.bf16.mxu0 0
    %292 = vmatpush1.bf16.msra.mxu0 %v279
    %293 = vmatprep.subr.bf16.mxu0 0
    %294 = vmatpush1.bf16.msra.mxu0 %v278
    %295 = vmatprep.subr.bf16.mxu0 0
    %296 = vmatpush1.bf16.msra.mxu0 %v277
    %297 = vmatprep.subr.bf16.mxu0 0
    %298 = vmatpush1.bf16.msra.mxu0 %v276
    %299 = vmatprep.subr.bf16.mxu0 0
    %300 = vmatpush1.bf16.msra.mxu0 %v275
    %301 = vmatprep.subr.bf16.mxu0 0
    %302 = vmatpush1.bf16.msra.mxu0 %v274
    %303 = vmatprep.subr.bf16.mxu0 0
    %304 = vmatpush1.bf16.msra.mxu0 %v273
    %305 = vmatprep.subr.bf16.mxu0 0
    %306 = vmatpush2.bf16.msra.mxu0 0
    %307 = vmatprep.subr.bf16.mxu0 0
    %308 = vmatpush2.bf16.msra.mxu0 0
    %309 = vmatprep.subr.bf16.mxu0 0
    %310 = vmatpush2.bf16.msra.mxu0 0
    %311 = vmatprep.subr.bf16.mxu0 0
    %312 = vmatpush2.bf16.msra.mxu0 0
    %313 = vmatprep.subr.bf16.mxu0 0
    %314 = vmatpush2.bf16.msra.mxu0 0
    %315 = vmatprep.subr.bf16.mxu0 0
    %316 = vmatpush2.bf16.msra.mxu0 0
    %317 = vmatprep.subr.bf16.mxu0 0
    %318 = vmatpush2.bf16.msra.mxu0 0
    %319 = vmatprep.subr.bf16.mxu0 0
    %320 = vmatpush2.bf16.msra.mxu0 0
    %321 = vmatprep.mubr.bf16.mxu0 0
    %322 = vmatmul.mubr.bf16.gmra.mxu0 %v239
    %v323 = vpop.f32.mrf.mxu0
    %v324 = vadd.f32 %v233, %v323
    %v325 = vpop.f32.mrf.mxu0
    %v326 = vpop.f32.mrf.mxu0
    %v327 = vadd.f32 %v233, %v326
    %v328 = vpop.f32.mrf.mxu0
    %329 = vdwg.mxu0
    %v330 = vmax.f32 %v324, 0.0
    %v331 = vmax.f32 %v327, 0.0
    %v332 = vpack.c.bf16 %v331, %v330
    %v334 = vunpack.c.l.b16 %v332
    %v335 = vunpack.c.h.b16 %v332
    %v336 = vpack.c.b16 %v334, %v334
    %v337 = vpack.c.b16 %v335, %v335
    %340 = vst [vmem:[#allocation3] sm:$0xf] %v336
    %341 = vst [vmem:[#allocation3 + $0x4] sm:$0xf] %v337
    %v342 = vld [vmem:[#allocation3] sm:$0xf]
    %v343 = vld [vmem:[#allocation3 + $0x4] sm:$0xf]
    %v344 = vld [vmem:[#allocation10] sm:$0xf]
    %v345 = vld [vmem:[#allocation10 + $0x4] sm:$0xf]
    %v346 = vld [vmem:[#allocation10 + $0x8] sm:$0xf]
    %v347 = vld [vmem:[#allocation10 + $0xc] sm:$0xf]
    %v348 = vld [vmem:[#allocation10 + $0x10] sm:$0xf]
    %v349 = vld [vmem:[#allocation10 + $0x14] sm:$0xf]
    %v350 = vld [vmem:[#allocation10 + $0x18] sm:$0xf]
    %v351 = vld [vmem:[#allocation10 + $0x1c] sm:$0xf]
    %v352 = vld [vmem:[#allocation10 + $0x20] sm:$0xf]
    %v353 = vld [vmem:[#allocation10 + $0x24] sm:$0xf]
    %v354 = vld [vmem:[#allocation10 + $0x28] sm:$0xf]
    %v355 = vld [vmem:[#allocation10 + $0x2c] sm:$0xf]
    %v356 = vld [vmem:[#allocation10 + $0x30] sm:$0xf]
    %v357 = vld [vmem:[#allocation10 + $0x34] sm:$0xf]
    %v358 = vld [vmem:[#allocation10 + $0x38] sm:$0xf]
    %v359 = vld [vmem:[#allocation10 + $0x3c] sm:$0xf]
    %v360 = vld [vmem:[%s6] sm:$0x1]
    %v362 = vlaneseq
    %v363 = vshrl.u32 %v362, 7
    %v364 = vsub.s32 0, %v363
    %v365 = vrot.slane %v360, %v364
    %v369 = vunpack.c.l.b16 %v342
    %v370 = vunpack.c.l.b16 %v343
    %v371 = vpack.c.b16 %v370, %v369
    %v389 = vunpack.c.l.b16 %v344
    %v390 = vunpack.c.l.b16 %v345
    %v391 = vunpack.c.l.b16 %v346
    %v392 = vunpack.c.l.b16 %v347
    %v393 = vunpack.c.l.b16 %v348
    %v394 = vunpack.c.l.b16 %v349
    %v395 = vunpack.c.l.b16 %v350
    %v396 = vunpack.c.l.b16 %v351
    %v397 = vunpack.c.l.b16 %v352
    %v398 = vunpack.c.l.b16 %v353
    %v399 = vunpack.c.l.b16 %v354
    %v400 = vunpack.c.l.b16 %v355
    %v401 = vunpack.c.l.b16 %v356
    %v402 = vunpack.c.l.b16 %v357
    %v403 = vunpack.c.l.b16 %v358
    %v404 = vunpack.c.l.b16 %v359
    %v405 = vpack.c.b16 %v390, %v389
    %v406 = vpack.c.b16 %v392, %v391
    %v407 = vpack.c.b16 %v394, %v393
    %v408 = vpack.c.b16 %v396, %v395
    %v409 = vpack.c.b16 %v398, %v397
    %v410 = vpack.c.b16 %v400, %v399
    %v411 = vpack.c.b16 %v402, %v401
    %v412 = vpack.c.b16 %v404, %v403
    %421 = vmatprep.subr.bf16.mxu0 0
    %422 = vmatpush1.bf16.msra.mxu0 %v412
    %423 = vmatprep.subr.bf16.mxu0 0
    %424 = vmatpush1.bf16.msra.mxu0 %v411
    %425 = vmatprep.subr.bf16.mxu0 0
    %426 = vmatpush1.bf16.msra.mxu0 %v410
    %427 = vmatprep.subr.bf16.mxu0 0
    %428 = vmatpush1.bf16.msra.mxu0 %v409
    %429 = vmatprep.subr.bf16.mxu0 0
    %430 = vmatpush1.bf16.msra.mxu0 %v408
    %431 = vmatprep.subr.bf16.mxu0 0
    %432 = vmatpush1.bf16.msra.mxu0 %v407
    %433 = vmatprep.subr.bf16.mxu0 0
    %434 = vmatpush1.bf16.msra.mxu0 %v406
    %435 = vmatprep.subr.bf16.mxu0 0
    %436 = vmatpush1.bf16.msra.mxu0 %v405
    %437 = vmatprep.subr.bf16.mxu0 0
    %438 = vmatpush2.bf16.msra.mxu0 0
    %439 = vmatprep.subr.bf16.mxu0 0
    %440 = vmatpush2.bf16.msra.mxu0 0
    %441 = vmatprep.subr.bf16.mxu0 0
    %442 = vmatpush2.bf16.msra.mxu0 0
    %443 = vmatprep.subr.bf16.mxu0 0
    %444 = vmatpush2.bf16.msra.mxu0 0
    %445 = vmatprep.subr.bf16.mxu0 0
    %446 = vmatpush2.bf16.msra.mxu0 0
    %447 = vmatprep.subr.bf16.mxu0 0
    %448 = vmatpush2.bf16.msra.mxu0 0
    %449 = vmatprep.subr.bf16.mxu0 0
    %450 = vmatpush2.bf16.msra.mxu0 0
    %451 = vmatprep.subr.bf16.mxu0 0
    %452 = vmatpush2.bf16.msra.mxu0 0
    %453 = vmatprep.mubr.bf16.mxu0 0
    %454 = vmatmul.mubr.bf16.gmra.mxu0 %v371
    %v455 = vpop.f32.mrf.mxu0
    %v456 = vadd.f32 %v365, %v455
    %v457 = vpop.f32.mrf.mxu0
    %v458 = vpop.f32.mrf.mxu0
    %v459 = vadd.f32 %v365, %v458
    %v460 = vpop.f32.mrf.mxu0
    %461 = vdwg.mxu0
    %462 = vst [vmem:[#allocation12] sm:$0xff] %v456
    %463 = vst [vmem:[#allocation12 + $0x8] sm:$0xff] %v459
    // Predicated region
    $region46: #{tpu_custom_call.1} parent=1 // pred_check
      _
    $region47: #{tpu_custom_call.1} parent=1 // pred_check_branch
      %465 = sbr.rel (0) target = $region49
    $region48: #{tpu_custom_call.1} parent=1 // pred_region
      %s467 = ssub.s32 256, 256
      %468 = vsyncadd [#allocation6], %s467
      %s469 = sshll.u32 [#allocation12], 4
      %s470 = int_to_ptr.vmem [resolvable:$true] %s469
      %475 = dma.vmem_to_hbm [thread:$0]  %s470, 256, %s7, [#allocation6], 128, 128, 8
    $region49: #{tpu_custom_call.1} parent=1 // pred_fallthru
      _
    // Predicated region
    $region50: #{tpu_custom_call.1} parent=1 // pred_check
      _
    $region51: #{tpu_custom_call.1} parent=1 // pred_check_branch
      %477 = sbr.rel (0) target = $region53
    $region52: #{tpu_custom_call.1} parent=1 // pred_region
      %478 = dma.done [#allocation6], 256
    $region53: #{tpu_custom_call.1} parent=1 // pred_fallthru
      _
    %479 = vsyncpa [#allocation5], 1
    %480 = vsyncpa [#allocation8], 1
    %481 = vsyncpa [#allocation11], 1
    %482 = vsyncpa [#allocation6], 1

</llo_original>
